<compile_context>
chip_gen: v7x
topology: tpu7x:2x2x1
jax: 0.10.0
libtpu: 0.0.40
codegen_flags: <defaults>
</compile_context>

<pallas_src>
import functools

import jax
import jax.numpy as jnp
from jax.experimental import pallas as pl
from jax.experimental.pallas import tpu as pltpu


_VMEM_LIMIT_BYTES = 48 * 1024 * 1024   # safe on v7x (64 MiB/TC), ample headroom on v5e/v6e
_TARGET_BLOCK_BYTES = 4 << 20          # ~4 MiB blocks: amortizes ~0.35 us/step, fits budget


# ---------------------------------------------------------------------------
# kernels
# ---------------------------------------------------------------------------

def _actnorm_apply_kernel(x_ref, sc_ref, sh_ref, y_ref):
    """y = x * scale + shift; scale/shift are (1, tc) and broadcast over rows."""
    y = x_ref[...].astype(jnp.float32) * sc_ref[...] + sh_ref[...]
    y_ref[...] = y.astype(y_ref.dtype)


def _actnorm_init_kernel(x_ref, ls_ref, sc_ref, sh_ref, *,
                         eps, total_rows, rows_per_block):
    """Per-channel mean/var over the batch dim -> (log_scale, scale, shift).

    ls_ref / sh_ref double as the per-channel sum / sum-of-squares accumulators
    across the row-tile grid ("arbitrary" reduction axis) and are overwritten
    with the final parameter values on the last step.
    """
    i = pl.program_id(0)
    is_last = i == pl.num_programs(0) - 1

    @pl.when(i == 0)
    def _():
        ls_ref[...] = jnp.zeros_like(ls_ref)     # running sum(x)
        sh_ref[...] = jnp.zeros_like(sh_ref)     # running sum(x^2)

    @pl.when(jnp.logical_not(is_last))
    def _():
        xb = x_ref[...].astype(jnp.float32)      # full tile: no mask needed
        ls_ref[...] += jnp.sum(xb, axis=0, keepdims=True)
        sh_ref[...] += jnp.sum(xb * xb, axis=0, keepdims=True)

    @pl.when(is_last)
    def _():
        xb = x_ref[...].astype(jnp.float32)
        # Ragged last tile: mask rows past the end of the array (only here).
        row = i * rows_per_block + jax.lax.broadcasted_iota(jnp.int32, xb.shape, 0)
        xb = jnp.where(row < total_rows, xb, 0.0)
        s = ls_ref[...] + jnp.sum(xb, axis=0, keepdims=True)
        sq = sh_ref[...] + jnp.sum(xb * xb, axis=0, keepdims=True)

        inv_n = 1.0 / float(total_rows)
        mean = s * inv_n
        # Single-pass E[x^2] - mean^2 in f32; clamp tiny negative cancellation.
        var = jnp.maximum(sq * inv_n - mean * mean, 0.0)
        log_scale = -0.5 * jnp.log(var + eps)    # == log(1 / sqrt(var + eps))
        scale = jnp.exp(log_scale)
        ls_ref[...] = log_scale
        sc_ref[...] = scale
        sh_ref[...] = -mean * scale


# ---------------------------------------------------------------------------
# tiling helpers
# ---------------------------------------------------------------------------

def _tiles(n_rows, n_cols, itemsize, target_block_bytes=_TARGET_BLOCK_BYTES):
    """Pick (row_tile, col_tile).

    * sublane alignment follows dtype packing: 8 (f32) / 16 (bf16) / 32 (i8).
    * channel tile is full C unless even a minimum-height strip blows the block
      budget, in which case it is a multiple of 128 (lane-dense stores).
    * row tile targets ~target_block_bytes per block and leaves >= 2 row blocks
      when B allows, so the parallel grid axis can span both v7x TensorCores.
    """
    align = max(8, 32 // max(1, itemsize))
    if n_cols > 128 and n_cols * align * itemsize > target_block_bytes:
        tc = max(128, (target_block_bytes // (align * itemsize)) // 128 * 128)
        tc = min(tc, n_cols)
    else:
        tc = n_cols
    cap = max(align, target_block_bytes // max(1, tc * itemsize))
    tb = min(n_rows, cap)
    if n_rows > align:
        tb = min(tb, -(-n_rows // 2))            # >= 2 row blocks when possible
    tb = max(align, tb - tb % align) if tb >= align else n_rows
    return tb, tc


# ---------------------------------------------------------------------------
# wrappers
# ---------------------------------------------------------------------------

def actnorm_init(x, eps=1e-5, *, block_rows=None):
    """Data-dependent init (the `not self._init` branch).

    Returns (log_scale, scale, shift), each of shape (C,), with
    scale == exp(log_scale) so the apply path never re-runs the exp.
    """
    B, C = x.shape
    itemsize = jnp.dtype(x.dtype).itemsize
    tb = block_rows if block_rows is not None else _tiles(B, C, itemsize)[0]
    ls2, sc2, sh2 = pl.pallas_call(
        functools.partial(_actnorm_init_kernel, eps=eps, total_rows=B,
                          rows_per_block=tb),
        out_shape=(jax.ShapeDtypeStruct((1, C), jnp.float32),
                   jax.ShapeDtypeStruct((1, C), jnp.float32),
                   jax.ShapeDtypeStruct((1, C), jnp.float32)),
        grid=(pl.cdiv(B, tb),),
        in_specs=[pl.BlockSpec((tb, C), lambda i: (i, 0))],
        out_specs=(pl.BlockSpec((1, C), lambda i: (0, 0)),
                   pl.BlockSpec((1, C), lambda i: (0, 0)),
                   pl.BlockSpec((1, C), lambda i: (0, 0))),
        compiler_params=pltpu.CompilerParams(
            dimension_semantics=("arbitrary",),
            vmem_limit_bytes=_VMEM_LIMIT_BYTES),
    )(x)
    return ls2[0], sc2[0], sh2[0]


def actnorm_apply(x, scale, shift, *, block_rows=None, block_cols=None):
    """y = x * scale + shift, tiled over (batch rows, channel lanes)."""
    B, C = x.shape
    itemsize = jnp.dtype(x.dtype).itemsize
    tb_def, tc_def = _tiles(B, C, itemsize)
    tb = block_rows if block_rows is not None else tb_def
    tc = block_cols if block_cols is not None else tc_def
    sc2 = scale.reshape(1, C).astype(jnp.float32)
    sh2 = shift.reshape(1, C).astype(jnp.float32)
    cost = pl.CostEstimate(flops=2 * B * C, transcendentals=0,
                           bytes_accessed=2 * B * C * itemsize + 8 * C)
    return pl.pallas_call(
        _actnorm_apply_kernel,
        out_shape=jax.ShapeDtypeStruct((B, C), x.dtype),
        grid=(pl.cdiv(B, tb), pl.cdiv(C, tc)),
        in_specs=[pl.BlockSpec((tb, tc), lambda i, j: (i, j)),
                  pl.BlockSpec((1, tc), lambda i, j: (0, j)),
                  pl.BlockSpec((1, tc), lambda i, j: (0, j))],
        out_specs=pl.BlockSpec((tb, tc), lambda i, j: (i, j)),
        compiler_params=pltpu.CompilerParams(
            dimension_semantics=("parallel", "parallel"),
            vmem_limit_bytes=_VMEM_LIMIT_BYTES),
        cost_estimate=cost,
    )(x, sc2, sh2)


def actnorm_forward(x, log_scale, shift, scale=None, *, block_rows=None,
                    block_cols=None):
    """ActNorm.forward after initialization: returns (y, logdet).

    `scale` (== exp(log_scale)) may be passed from actnorm_init to skip the
    one-off exp; logdet is a (C,) vector sum, done here rather than in a
    dedicated kernel launch.
    """
    if scale is None:
        scale = jnp.exp(log_scale.astype(jnp.float32))
    y = actnorm_apply(x, scale, shift, block_rows=block_rows,
                      block_cols=block_cols)
    logdet = jnp.sum(log_scale.astype(jnp.float32))
    return y, logdet


# ---------------------------------------------------------------------------
# pure-JAX reference (transcription of the PyTorch module) and test
# ---------------------------------------------------------------------------

def _actnorm_ref(x, eps):
    C = x.shape[1]
    mean = jnp.mean(jnp.transpose(x, (1, 0)).reshape(C, -1), axis=1)
    zero_mean = x - mean[None, :]
    var = jnp.mean(jnp.transpose(zero_mean ** 2, (1, 0)).reshape(C, -1), axis=1)
    std = jnp.sqrt(var + eps)
    log_scale = jnp.log(1.0 / std)
    shift = -mean * jnp.exp(log_scale)
    y = x * jnp.exp(log_scale)[None, :] + shift[None, :]
    logdet = jnp.sum(log_scale)
    return y, logdet, log_scale, shift


if __name__ == "__main__":
    # TODO(synk): the stateful self._init flag / in-place Parameter mutation has
    # no functional equivalent; init returns the params instead.
    eps = 1e-5
    B, C = 16, 128                      # (batch, channels); channels on lanes
    key = jax.random.PRNGKey(0)
    x = jax.random.normal(key, (B, C), dtype=jnp.float32) * 1.7 + 0.3

    # block_rows=8 so the small demo exercises a multi-step reduction grid.
    init_fn = jax.jit(functools.partial(actnorm_init, eps=eps, block_rows=8))
    log_scale, scale, shift = init_fn(x)
    jax.block_until_ready((log_scale, scale, shift))

    fwd = jax.jit(functools.partial(actnorm_forward, block_rows=8))
    y, logdet = fwd(x, log_scale, shift, scale)
    jax.block_until_ready((y, logdet))

    y_ref, logdet_ref, ls_ref, sh_ref = _actnorm_ref(x, eps)
    assert y.shape == x.shape and y.dtype == x.dtype
    assert bool(jnp.allclose(log_scale, ls_ref, atol=1e-5, rtol=1e-5))
    assert bool(jnp.allclose(scale, jnp.exp(ls_ref), atol=1e-5, rtol=1e-5))
    assert bool(jnp.allclose(shift, sh_ref, atol=1e-5, rtol=1e-5))
    assert bool(jnp.allclose(y, y_ref, atol=1e-5, rtol=1e-5))
    assert bool(jnp.allclose(logdet, logdet_ref, atol=1e-5, rtol=1e-5))

    print("KERNEL_OK")
</pallas_src>

<mosaic_0001>
module attributes {stable_mosaic.version = 11 : i64} {
  func.func @_actnorm_init_kernel(%arg0: i32, %arg1: memref<8x128xf32, #tpu.memory_space<vmem>>, %arg2: memref<1x128xf32, #tpu.memory_space<vmem>>, %arg3: memref<1x128xf32, #tpu.memory_space<vmem>>, %arg4: memref<1x128xf32, #tpu.memory_space<vmem>>) attributes {dimension_semantics = [#tpu.dimension_semantics<arbitrary>], iteration_bounds = array<i64: 2>, scalar_prefetch = 0 : i64, scratch_operands = 0 : i64, tpu.core_type = #tpu.core_type<tc>, window_params = [{transform_indices = @transform_0, window_bounds = array<i64: 8, 128>}, {pipeline_mode = #tpu.pipeline_mode<synchronous>, transform_indices = @transform_1, window_bounds = array<i64: 1, 128>}, {pipeline_mode = #tpu.pipeline_mode<synchronous>, transform_indices = @transform_2, window_bounds = array<i64: 1, 128>}, {pipeline_mode = #tpu.pipeline_mode<synchronous>, transform_indices = @transform_3, window_bounds = array<i64: 1, 128>}]} {
    %c1_i32 = arith.constant 1 : i32
    %0 = arith.cmpi eq, %arg0, %c1_i32 : i32
    %c0_i32 = arith.constant 0 : i32
    %1 = arith.cmpi eq, %arg0, %c0_i32 : i32
    %2 = arith.extui %1 : i1 to i32
    %c0_i32_0 = arith.constant 0 : i32
    %3 = arith.cmpi ne, %2, %c0_i32_0 : i32
    scf.if %3 {
      %cst = arith.constant 0.000000e+00 : f32
      %9 = vector.broadcast %cst : f32 to vector<1x128xf32>
      %c0 = arith.constant 0 : index
      %c0_3 = arith.constant 0 : index
      %10 = vector.load %arg2[%c0, %c0_3] : memref<1x128xf32, #tpu.memory_space<vmem>>, vector<1x128xf32>
      tpu.vector_store %arg2[%c0, %c0_3], %9 {strides = array<i32>} : memref<1x128xf32, #tpu.memory_space<vmem>>, vector<1x128xf32>,
      %cst_4 = arith.constant 0.000000e+00 : f32
      %11 = vector.broadcast %cst_4 : f32 to vector<1x128xf32>
      %c0_5 = arith.constant 0 : index
      %c0_6 = arith.constant 0 : index
      %12 = vector.load %arg4[%c0_5, %c0_6] : memref<1x128xf32, #tpu.memory_space<vmem>>, vector<1x128xf32>
      tpu.vector_store %arg4[%c0_5, %c0_6], %11 {strides = array<i32>} : memref<1x128xf32, #tpu.memory_space<vmem>>, vector<1x128xf32>,
    } else {
    }
    %true = arith.constant true
    %4 = arith.xori %0, %true : i1
    %5 = arith.extui %4 : i1 to i32
    %c0_i32_1 = arith.constant 0 : i32
    %6 = arith.cmpi ne, %5, %c0_i32_1 : i32
    scf.if %6 {
      %c0 = arith.constant 0 : index
      %c0_3 = arith.constant 0 : index
      %9 = vector.load %arg1[%c0, %c0_3] : memref<8x128xf32, #tpu.memory_space<vmem>>, vector<8x128xf32>
      %c0_4 = arith.constant 0 : index
      %c0_5 = arith.constant 0 : index
      %10 = vector.load %arg2[%c0_4, %c0_5] : memref<1x128xf32, #tpu.memory_space<vmem>>, vector<1x128xf32>
      %cst = arith.constant dense<0.000000e+00> : vector<128xf32>
      %11 = vector.multi_reduction <add>, %9, %cst [0] : vector<8x128xf32> to vector<128xf32>
      %12 = vector.shape_cast %11 : vector<128xf32> to vector<1x128xf32>
      %13 = arith.addf %10, %12 : vector<1x128xf32>
      %c0_6 = arith.constant 0 : index
      %c0_7 = arith.constant 0 : index
      %14 = vector.load %arg2[%c0_6, %c0_7] : memref<1x128xf32, #tpu.memory_space<vmem>>, vector<1x128xf32>
      tpu.vector_store %arg2[%c0_6, %c0_7], %13 {strides = array<i32>} : memref<1x128xf32, #tpu.memory_space<vmem>>, vector<1x128xf32>,
      %c0_8 = arith.constant 0 : index
      %c0_9 = arith.constant 0 : index
      %15 = vector.load %arg4[%c0_8, %c0_9] : memref<1x128xf32, #tpu.memory_space<vmem>>, vector<1x128xf32>
      %16 = arith.mulf %9, %9 : vector<8x128xf32>
      %cst_10 = arith.constant dense<0.000000e+00> : vector<128xf32>
      %17 = vector.multi_reduction <add>, %16, %cst_10 [0] : vector<8x128xf32> to vector<128xf32>
      %18 = vector.shape_cast %17 : vector<128xf32> to vector<1x128xf32>
      %19 = arith.addf %15, %18 : vector<1x128xf32>
      %c0_11 = arith.constant 0 : index
      %c0_12 = arith.constant 0 : index
      %20 = vector.load %arg4[%c0_11, %c0_12] : memref<1x128xf32, #tpu.memory_space<vmem>>, vector<1x128xf32>
      tpu.vector_store %arg4[%c0_11, %c0_12], %19 {strides = array<i32>} : memref<1x128xf32, #tpu.memory_space<vmem>>, vector<1x128xf32>,
    } else {
    }
    %7 = arith.extui %0 : i1 to i32
    %c0_i32_2 = arith.constant 0 : i32
    %8 = arith.cmpi ne, %7, %c0_i32_2 : i32
    scf.if %8 {
      %c0 = arith.constant 0 : index
      %c0_3 = arith.constant 0 : index
      %9 = vector.load %arg1[%c0, %c0_3] : memref<8x128xf32, #tpu.memory_space<vmem>>, vector<8x128xf32>
      %c8_i32 = arith.constant 8 : i32
      %10 = arith.muli %arg0, %c8_i32 : i32
      %11 = tpu.iota {dimensions = array<i32: 0>} : vector<8x128xi32>
      %12 = vector.broadcast %10 : i32 to vector<8x128xi32>
      %13 = arith.addi %12, %11 : vector<8x128xi32>
      %c16_i32 = arith.constant 16 : i32
      %14 = vector.broadcast %c16_i32 : i32 to vector<8x128xi32>
      %15 = arith.cmpi slt, %13, %14 : vector<8x128xi32>
      %cst = arith.constant 0.000000e+00 : f32
      %16 = vector.broadcast %cst : f32 to vector<8x128xf32>
      %17 = arith.select %15, %9, %16 : vector<8x128xi1>, vector<8x128xf32>
      %c0_4 = arith.constant 0 : index
      %c0_5 = arith.constant 0 : index
      %18 = vector.load %arg2[%c0_4, %c0_5] : memref<1x128xf32, #tpu.memory_space<vmem>>, vector<1x128xf32>
      %cst_6 = arith.constant dense<0.000000e+00> : vector<128xf32>
      %19 = vector.multi_reduction <add>, %17, %cst_6 [0] : vector<8x128xf32> to vector<128xf32>
      %20 = vector.shape_cast %19 : vector<128xf32> to vector<1x128xf32>
      %21 = arith.addf %18, %20 : vector<1x128xf32>
      %c0_7 = arith.constant 0 : index
      %c0_8 = arith.constant 0 : index
      %22 = vector.load %arg4[%c0_7, %c0_8] : memref<1x128xf32, #tpu.memory_space<vmem>>, vector<1x128xf32>
      %23 = arith.mulf %17, %17 : vector<8x128xf32>
      %cst_9 = arith.constant dense<0.000000e+00> : vector<128xf32>
      %24 = vector.multi_reduction <add>, %23, %cst_9 [0] : vector<8x128xf32> to vector<128xf32>
      %25 = vector.shape_cast %24 : vector<128xf32> to vector<1x128xf32>
      %26 = arith.addf %22, %25 : vector<1x128xf32>
      %cst_10 = arith.constant 6.250000e-02 : f32
      %27 = vector.broadcast %cst_10 : f32 to vector<1x128xf32>
      %28 = arith.mulf %21, %27 : vector<1x128xf32>
      %cst_11 = arith.constant 6.250000e-02 : f32
      %29 = vector.broadcast %cst_11 : f32 to vector<1x128xf32>
      %30 = arith.mulf %26, %29 : vector<1x128xf32>
      %31 = arith.mulf %28, %28 : vector<1x128xf32>
      %32 = arith.subf %30, %31 : vector<1x128xf32>
      %cst_12 = arith.constant 0.000000e+00 : f32
      %33 = vector.broadcast %cst_12 : f32 to vector<1x128xf32>
      %34 = arith.maximumf %32, %33 : vector<1x128xf32>
      %cst_13 = arith.constant 9.99999974E-6 : f32
      %35 = vector.broadcast %cst_13 : f32 to vector<1x128xf32>
      %36 = arith.addf %34, %35 : vector<1x128xf32>
      %37 = math.log %36 : vector<1x128xf32>
      %cst_14 = arith.constant -5.000000e-01 : f32
      %38 = vector.broadcast %cst_14 : f32 to vector<1x128xf32>
      %39 = arith.mulf %38, %37 : vector<1x128xf32>
      %40 = math.exp %39 : vector<1x128xf32>
      %c0_15 = arith.constant 0 : index
      %c0_16 = arith.constant 0 : index
      %41 = vector.load %arg2[%c0_15, %c0_16] : memref<1x128xf32, #tpu.memory_space<vmem>>, vector<1x128xf32>
      tpu.vector_store %arg2[%c0_15, %c0_16], %39 {strides = array<i32>} : memref<1x128xf32, #tpu.memory_space<vmem>>, vector<1x128xf32>,
      %c0_17 = arith.constant 0 : index
      %c0_18 = arith.constant 0 : index
      %42 = vector.load %arg3[%c0_17, %c0_18] : memref<1x128xf32, #tpu.memory_space<vmem>>, vector<1x128xf32>
      tpu.vector_store %arg3[%c0_17, %c0_18], %40 {strides = array<i32>} : memref<1x128xf32, #tpu.memory_space<vmem>>, vector<1x128xf32>,
      %cst_19 = arith.constant 0.000000e+00 : f32
      %43 = vector.broadcast %cst_19 : f32 to vector<1x128xf32>
      %44 = arith.subf %43, %28 : vector<1x128xf32>
      %45 = arith.mulf %44, %40 : vector<1x128xf32>
      %c0_20 = arith.constant 0 : index
      %c0_21 = arith.constant 0 : index
      %46 = vector.load %arg4[%c0_20, %c0_21] : memref<1x128xf32, #tpu.memory_space<vmem>>, vector<1x128xf32>
      tpu.vector_store %arg4[%c0_20, %c0_21], %45 {strides = array<i32>} : memref<1x128xf32, #tpu.memory_space<vmem>>, vector<1x128xf32>,
    } else {
    }
    return
  }
  func.func @transform_0(%arg0: i32) -> (i32, i32) {
    %c0_i32 = arith.constant 0 : i32
    %c0_i32_0 = arith.constant 0 : i32
    return %arg0, %c0_i32 : i32, i32
  }
  func.func @transform_1(%arg0: i32) -> (i32, i32) {
    %c0_i32 = arith.constant 0 : i32
    %c0_i32_0 = arith.constant 0 : i32
    %c0_i32_1 = arith.constant 0 : i32
    return %c0_i32, %c0_i32_0 : i32, i32
  }
  func.func @transform_2(%arg0: i32) -> (i32, i32) {
    %c0_i32 = arith.constant 0 : i32
    %c0_i32_0 = arith.constant 0 : i32
    %c0_i32_1 = arith.constant 0 : i32
    return %c0_i32, %c0_i32_0 : i32, i32
  }
  func.func @transform_3(%arg0: i32) -> (i32, i32) {
    %c0_i32 = arith.constant 0 : i32
    %c0_i32_0 = arith.constant 0 : i32
    %c0_i32_1 = arith.constant 0 : i32
    return %c0_i32, %c0_i32_0 : i32, i32
  }
}

</mosaic_0001>

<llo_original>
// kernel: actnorm_init.1
$region0: #{actnorm_init.1}
  #allocation0 [shape = 'u32[]', space=smem, size = 0x4, offset = 0x4, fixed_abs, tag = 'smem constant byte address 0x4 - core index']
  #allocation1 [shape = 'u32[144,128]{1,0:T(1,128)}', space=vmem, size = 0x12000, scoped, tag = 'internal scratch']
  %s0 = inlined_call_operand.hbm [shape: f32[16,128], index: 0, kind: input, shape index: {}]
  %s1 = inlined_call_operand.hbm [shape: f32[1,128], index: 1, kind: output, shape index: {0}]
  %s2 = inlined_call_operand.hbm [shape: f32[1,128], index: 2, kind: output, shape index: {1}]
  %s3 = inlined_call_operand.hbm [shape: f32[1,128], index: 3, kind: output, shape index: {2}]
  %4 = xla_tuple %s1, %s2, %s3
  %s5 = sld [smem:[#allocation0]]
  $region69: #{actnorm_init.1} parent=0
    _
  %s7 = ssub.s32 1, %s5
  %s8 = scalar_select 0, %s7, %s5
  $region1: #{actnorm_init.1} parent=0
    #allocation2 [shape = 'u8[8192]{0}', space=vmem, size = 0x2000, scoped, tag = 'input window, operand 0']
    #allocation3 [shape = 's32[2]{0}', space=sflag, size = 0x8, scoped, tag = 'scoped memory for actnorm_init.1']
    #allocation4 [shape = 's32[2]{0}', space=sflag, size = 0x8, scoped, tag = 'scoped memory for actnorm_init.1']
    #allocation5 [shape = 'u8[512]{0}', space=vmem, size = 0x400, scoped, tag = 'output window, operand 0, single buffered']
    #allocation6 [shape = 'u8[512]{0}', space=vmem, size = 0x400, scoped, tag = 'output window, operand 1, single buffered']
    #allocation7 [shape = 's32[1]{0}', space=sflag, size = 0x4, scoped, tag = 'scoped memory for actnorm_init.1']
    #allocation8 [shape = 'u8[512]{0}', space=vmem, size = 0x400, scoped, tag = 'output window, operand 2, single buffered']
    %9 = vsyncpa [#allocation3], 0
    %s10 = scalar_lea.sflag [#allocation3], 1
    %11 = vsyncpa %s10, 0
    %12 = vsyncpa [#allocation4], 0
    %13 = vsyncpa [#allocation7], 0
    loop: start=0, step=1, limit=4
    $region2: #{actnorm_init.1} parent=1 // loop_pre_header
      _
    $region3: #{actnorm_init.1} parent=1 // loop_header
      %s15 = sphi 0, %s19
      %p16 = scmp.ge.s32.totalorder %s15, 4
      %s25 = sphi 0, %s27
      %s28 = sphi 0, %s25
      %s29 = sphi 0, %s28
      %s45 = sphi 0, %s29
      %s49 = sphi 0, %s49
      %s51 = sphi 0, %s49
      %s52 = sphi 0, %s51
      %s66 = sphi 0, %s52
      %s70 = sphi 0, %s70
      %s72 = sphi 0, %s70
      %s73 = sphi 0, %s72
      %s87 = sphi 0, %s73
      %s91 = sphi 0, %s91
      %s93 = sphi 0, %s91
      %s94 = sphi 0, %s93
      %s108 = sphi 0, %s94
    $region4: #{actnorm_init.1} parent=1 // loop_header_branch
      %18 = sbr.rel (%p16) target = $region8
    $region5: #{actnorm_init.1} parent=1 // loop_body
      %s20 = ssub.s32 %s15, 1
      %s21 = ssub.s32 %s15, 2
      %s22 = sadd.s32 %s15, 1
      %s23 = ssub.s32 %s15, %s22
      %p24 = scmp.eq.s32.totalorder %s23, 0
      %s26 = sadd.s32 %s25, 1
      %s27 = scalar_select %p24, %s25, %s26
      %p30 = pneg %p24
      %p31 = scmp.eq.s32.totalorder %s15, 1
      %p32 = por %p30, %p31
      %p33 = scmp.ne.s32.totalorder %s25, %s28
      %p34 = scmp.eq.s32.totalorder %s15, 0
      %p35 = por %p33, %p34
      %p36 = scmp.ne.s32.totalorder %s25, %s28
      %p37 = scmp.eq.s32.totalorder %s20, 1
      %p38 = por %p36, %p37
      %p39 = scmp.ne.s32.totalorder %s28, %s29
      %p40 = scmp.eq.s32.totalorder %s20, 0
      %p41 = por %p39, %p40
      %p42 = scmp.ne.s32.totalorder %s28, %s29
      %p43 = scmp.eq.s32.totalorder %s21, 1
      %p44 = por %p42, %p43
      %p46 = scmp.ne.s32.totalorder %s29, %s45
      %p47 = scmp.eq.s32.totalorder %s21, 0
      %p48 = por %p46, %p47
      %s50 = sadd.s32 %s49, 1
      %p53 = scmp.eq.s32.totalorder %s15, 1
      %p54 = scmp.ne.s32.totalorder %s49, %s51
      %p55 = scmp.eq.s32.totalorder %s15, 0
      %p56 = por %p54, %p55
      %p57 = scmp.ne.s32.totalorder %s49, %s51
      %p58 = scmp.eq.s32.totalorder %s20, 1
      %p59 = por %p57, %p58
      %p60 = scmp.ne.s32.totalorder %s51, %s52
      %p61 = scmp.eq.s32.totalorder %s20, 0
      %p62 = por %p60, %p61
      %p63 = scmp.ne.s32.totalorder %s51, %s52
      %p64 = scmp.eq.s32.totalorder %s21, 1
      %p65 = por %p63, %p64
      %p67 = scmp.ne.s32.totalorder %s52, %s66
      %p68 = scmp.eq.s32.totalorder %s21, 0
      %p69 = por %p67, %p68
      %s71 = sadd.s32 %s70, 1
      %p74 = scmp.eq.s32.totalorder %s15, 1
      %p75 = scmp.ne.s32.totalorder %s70, %s72
      %p76 = scmp.eq.s32.totalorder %s15, 0
      %p77 = por %p75, %p76
      %p78 = scmp.ne.s32.totalorder %s70, %s72
      %p79 = scmp.eq.s32.totalorder %s20, 1
      %p80 = por %p78, %p79
      %p81 = scmp.ne.s32.totalorder %s72, %s73
      %p82 = scmp.eq.s32.totalorder %s20, 0
      %p83 = por %p81, %p82
      %p84 = scmp.ne.s32.totalorder %s72, %s73
      %p85 = scmp.eq.s32.totalorder %s21, 1
      %p86 = por %p84, %p85
      %p88 = scmp.ne.s32.totalorder %s73, %s87
      %p89 = scmp.eq.s32.totalorder %s21, 0
      %p90 = por %p88, %p89
      %s92 = sadd.s32 %s91, 1
      %p95 = scmp.eq.s32.totalorder %s15, 1
      %p96 = scmp.ne.s32.totalorder %s91, %s93
      %p97 = scmp.eq.s32.totalorder %s15, 0
      %p98 = por %p96, %p97
      %p99 = scmp.ne.s32.totalorder %s91, %s93
      %p100 = scmp.eq.s32.totalorder %s20, 1
      %p101 = por %p99, %p100
      %p102 = scmp.ne.s32.totalorder %s93, %s94
      %p103 = scmp.eq.s32.totalorder %s20, 0
      %p104 = por %p102, %p103
      %p105 = scmp.ne.s32.totalorder %s93, %s94
      %p106 = scmp.eq.s32.totalorder %s21, 1
      %p107 = por %p105, %p106
      %p109 = scmp.ne.s32.totalorder %s94, %s108
      %p110 = scmp.eq.s32.totalorder %s21, 0
      %p111 = por %p109, %p110
      %p112 = scmp.le.s32.totalorder 1, %s15
      %p113 = scmp.lt.s32.totalorder %s15, 3
      %p114 = pnand %p112, %p113
      %p115 = pneg %p114
      // Predicated region
      $region9: #{actnorm_init.1} parent=5 // pred_check
        _
      $region10: #{actnorm_init.1} parent=5 // pred_check_branch
        %117 = sbr.rel (%p114) target = $region12
      $region11: #{actnorm_init.1} parent=5 // pred_region
        %s118 = ssub.s32 %s15, 1
      $region12: #{actnorm_init.1} parent=5 // pred_fallthru
        _
      %p119 = scmp.lt.s32.totalorder %s15, 2
      // Predicated region
      $region13: #{actnorm_init.1} parent=5 // pred_check
        %p120 = pneg %p119
      $region14: #{actnorm_init.1} parent=5 // pred_check_branch
        %122 = sbr.rel (%p120) target = $region16
      $region15: #{actnorm_init.1} parent=5 // pred_region
        // Predicated region
        $region17: #{actnorm_init.1} parent=15 // pred_check
          %p123 = pneg %p35
        $region18: #{actnorm_init.1} parent=15 // pred_check_branch
          %125 = sbr.rel (%p123) target = $region20
        $region19: #{actnorm_init.1} parent=15 // pred_region
          %s126 = sand.u32 %s25, 1
          %s127 = scalar_lea.sflag [#allocation3], %s126
          %s128 = sand.u32 %s25, 1
          %s129 = smul.addr %s128, 8
          %s130 = scalar_lea.vmem [#allocation2], %s129
          %s132 = ssub.s32 128, 128
          %133 = vsyncadd %s127, %s132
          %s134 = smul.addr %s15, 128
          %s135 = scalar_lea.hbm %s0, %s134
          %s137 = sshll.u32 %s130, 4
          %s138 = int_to_ptr.vmem [resolvable:$true] %s137
          %140 = dma.hbm_to_vmem [thread:$0]  %s135, 128, %s138, %s127
        $region20: #{actnorm_init.1} parent=15 // pred_fallthru
          _
      $region16: #{actnorm_init.1} parent=5 // pred_fallthru
        _
      %p141 = scmp.le.s32.totalorder 1, %s15
      %p142 = scmp.lt.s32.totalorder %s15, 3
      %p143 = pnand %p141, %p142
      %p144 = pneg %p143
      // Predicated region
      $region21: #{actnorm_init.1} parent=5 // pred_check
        _
      $region22: #{actnorm_init.1} parent=5 // pred_check_branch
        %146 = sbr.rel (%p143) target = $region24
      $region23: #{actnorm_init.1} parent=5 // pred_region
        %s147 = ssub.s32 %s15, 1
        %s148 = sand.u32 %s28, 1
        %s149 = scalar_lea.sflag [#allocation3], %s148
        %s150 = sand.u32 %s28, 1
        %s151 = smul.addr %s150, 8
        %s152 = scalar_lea.vmem [#allocation2], %s151
        // Predicated region
        $region25: #{actnorm_init.1} parent=23 // pred_check
          %p153 = pneg %p41
        $region26: #{actnorm_init.1} parent=23 // pred_check_branch
          %155 = sbr.rel (%p153) target = $region28
        $region27: #{actnorm_init.1} parent=23 // pred_region
          %156 = dma.done %s149, 128
        $region28: #{actnorm_init.1} parent=23 // pred_fallthru
          _
        %s157 = sand.u32 %s28, 1
        %s158 = scalar_lea.sflag [#allocation3], %s157
        %s159 = sand.u32 %s28, 1
        %s160 = smul.addr %s159, 8
        %s161 = scalar_lea.vmem [#allocation2], %s160
        %p162 = pneg %p41
        %p163 = pneg %p38
        %p164 = pneg %p62
        %p165 = pneg %p59
        %p166 = pneg %p83
        %p167 = pneg %p80
        %p168 = pneg %p104
        %p169 = pneg %p101
        %p170 = scmp.eq.s32.totalorder %s20, 1
        %p171 = scmp.eq.s32.totalorder %s20, 0
        // Predicated region
        $region29: #{actnorm_init.1} parent=23 // pred_check
          %p172 = pneg %p171
        $region30: #{actnorm_init.1} parent=23 // pred_check_branch
          %174 = sbr.rel (%p172) target = $region32
        $region31: #{actnorm_init.1} parent=23 // pred_region
          %175 = vst [vmem:[#allocation5] sm:$0x1] 0.0
          %176 = vst [vmem:[#allocation8] sm:$0x1] 0.0
        $region32: #{actnorm_init.1} parent=23 // pred_fallthru
          _
        %p177 = scmp.ne.s32.totalorder %s20, 1
        // Predicated region
        $region33: #{actnorm_init.1} parent=23 // pred_check
          %p178 = pneg %p177
        $region34: #{actnorm_init.1} parent=23 // pred_check_branch
          %180 = sbr.rel (%p178) target = $region36
        $region35: #{actnorm_init.1} parent=23 // pred_region
          %v181 = vld [vmem:[%s152] sm:$0xff]
          %v182 = vld [vmem:[#allocation5] sm:$0x1]
          %v183 = vrot.slane %v181, 4
          %v184 = vadd.f32 %v181, %v183
          %v185 = vrot.slane %v184, 2
          %v186 = vadd.f32 %v184, %v185
          %v187 = vrot.slane %v186, 1
          %v188 = vadd.f32 %v186, %v187
          %v189 = vadd.f32 %v182, %v188
          %190 = vst [vmem:[#allocation5] sm:$0x1] %v189
          %v191 = vld [vmem:[#allocation8] sm:$0x1]
          %v192 = vmul.f32 %v181, %v181
          %v193 = vrot.slane %v192, 4
          %v194 = vadd.f32 %v192, %v193
          %v195 = vrot.slane %v194, 2
          %v196 = vadd.f32 %v194, %v195
          %v197 = vrot.slane %v196, 1
          %v198 = vadd.f32 %v196, %v197
          %v199 = vadd.f32 %v191, %v198
          %200 = vst [vmem:[#allocation8] sm:$0x1] %v199
        $region36: #{actnorm_init.1} parent=23 // pred_fallthru
          _
        // Predicated region
        $region37: #{actnorm_init.1} parent=23 // pred_check
          %p201 = pneg %p170
        $region38: #{actnorm_init.1} parent=23 // pred_check_branch
          %203 = sbr.rel (%p201) target = $region40
        $region39: #{actnorm_init.1} parent=23 // pred_region
          %v204 = vld [vmem:[%s152] sm:$0xff]
          %s205 = smul.u32 %s20, 8
          %v206 = vlaneseq
          %v207 = vshrl.u32 %v206, 7
          %v208 = vstv %s205
          %v209 = vadd.s32 %v208, %v207
          %vm210 = vcmp.lt.s32.totalorder %v209, 16
          %v211 = vsel %vm210, %v204, 0.0
          %v212 = vld [vmem:[#allocation5] sm:$0x1]
          %v213 = vrot.slane %v211, 4
          %v214 = vadd.f32 %v211, %v213
          %v215 = vrot.slane %v214, 2
          %v216 = vadd.f32 %v214, %v215
          %v217 = vrot.slane %v216, 1
          %v218 = vadd.f32 %v216, %v217
          %v219 = vadd.f32 %v212, %v218
          %v220 = vld [vmem:[#allocation8] sm:$0x1]
          %v221 = vmul.f32 %v211, %v211
          %v222 = vrot.slane %v221, 4
          %v223 = vadd.f32 %v221, %v222
          %v224 = vrot.slane %v223, 2
          %v225 = vadd.f32 %v223, %v224
          %v226 = vrot.slane %v225, 1
          %v227 = vadd.f32 %v225, %v226
          %v228 = vadd.f32 %v220, %v227
          %v229 = vmul.f32 %v219, 0.0625
          %v230 = vmul.f32 %v228, 0.0625
          %v231 = vmul.f32 %v229, %v229
          %v232 = vsub.f32 %v230, %v231
          %v233 = vmax.f32 %v232, 0.0
          %v234 = vadd.f32 %v233, 1e-05
          %v235 = vlog2.pop %v234
          %v236 = vmul.f32 %v235, 0.6931472
          %v237 = vmul.f32 %v236, -0.5
          %v238 = vmul.f32 %v237, 1.442695
          %v239 = vpow.pop %v238
          %240 = vst [vmem:[#allocation5] sm:$0x1] %v237
          %241 = vst [vmem:[#allocation6] sm:$0x1] %v239
          %v242 = vsub.f32 0.0, %v229
          %v243 = vmul.f32 %v242, %v239
          %244 = vst [vmem:[#allocation8] sm:$0x1] %v243
        $region40: #{actnorm_init.1} parent=23 // pred_fallthru
          _
        // Predicated region
        $region41: #{actnorm_init.1} parent=23 // pred_check
          %p245 = pneg %p59
        $region42: #{actnorm_init.1} parent=23 // pred_check_branch
          %247 = sbr.rel (%p245) target = $region44
        $region43: #{actnorm_init.1} parent=23 // pred_region
          %s249 = ssub.s32 16, 16
          %250 = vsyncadd [#allocation4], %s249
          %s252 = sshll.u32 [#allocation5], 4
          %s253 = int_to_ptr.vmem [resolvable:$true] %s252
          %255 = dma.vmem_to_hbm [thread:$0]  %s253, 16, %s1, [#allocation4]
        $region44: #{actnorm_init.1} parent=23 // pred_fallthru
          _
        // Predicated region
        $region45: #{actnorm_init.1} parent=23 // pred_check
          %p256 = pneg %p80
        $region46: #{actnorm_init.1} parent=23 // pred_check_branch
          %258 = sbr.rel (%p256) target = $region48
        $region47: #{actnorm_init.1} parent=23 // pred_region
          %s260 = ssub.s32 16, 16
          %261 = vsyncadd [#allocation7], %s260
          %s263 = sshll.u32 [#allocation6], 4
          %s264 = int_to_ptr.vmem [resolvable:$true] %s263
          %266 = dma.vmem_to_hbm [thread:$0]  %s264, 16, %s2, [#allocation7]
        $region48: #{actnorm_init.1} parent=23 // pred_fallthru
          _
        // Predicated region
        $region49: #{actnorm_init.1} parent=23 // pred_check
          %p267 = pneg %p101
        $region50: #{actnorm_init.1} parent=23 // pred_check_branch
          %269 = sbr.rel (%p267) target = $region52
        $region51: #{actnorm_init.1} parent=23 // pred_region
          %s271 = ssub.s32 16, 16
          %272 = vsyncadd [#allocation7], %s271
          %s274 = sshll.u32 [#allocation8], 4
          %s275 = int_to_ptr.vmem [resolvable:$true] %s274
          %277 = dma.vmem_to_hbm [thread:$0]  %s275, 16, %s3, [#allocation7]
        $region52: #{actnorm_init.1} parent=23 // pred_fallthru
          _
        // Predicated region
        $region53: #{actnorm_init.1} parent=23 // pred_check
          %p278 = pneg %p59
        $region54: #{actnorm_init.1} parent=23 // pred_check_branch
          %280 = sbr.rel (%p278) target = $region56
        $region55: #{actnorm_init.1} parent=23 // pred_region
          %281 = dma.done [#allocation4], 16
        $region56: #{actnorm_init.1} parent=23 // pred_fallthru
          _
        // Predicated region
        $region57: #{actnorm_init.1} parent=23 // pred_check
          %p282 = pneg %p80
        $region58: #{actnorm_init.1} parent=23 // pred_check_branch
          %284 = sbr.rel (%p282) target = $region60
        $region59: #{actnorm_init.1} parent=23 // pred_region
          %285 = dma.done [#allocation7], 16
        $region60: #{actnorm_init.1} parent=23 // pred_fallthru
          _
        // Predicated region
        $region61: #{actnorm_init.1} parent=23 // pred_check
          %p286 = pneg %p101
        $region62: #{actnorm_init.1} parent=23 // pred_check_branch
          %288 = sbr.rel (%p286) target = $region64
        $region63: #{actnorm_init.1} parent=23 // pred_region
          %289 = dma.done [#allocation7], 16
        $region64: #{actnorm_init.1} parent=23 // pred_fallthru
          _
      $region24: #{actnorm_init.1} parent=5 // pred_fallthru
        _
      %p290 = scmp.le.s32.totalorder 2, %s15
      // Predicated region
      $region65: #{actnorm_init.1} parent=5 // pred_check
        %p291 = pneg %p290
      $region66: #{actnorm_init.1} parent=5 // pred_check_branch
        %293 = sbr.rel (%p291) target = $region68
      $region67: #{actnorm_init.1} parent=5 // pred_region
        %s294 = ssub.s32 %s15, 2
      $region68: #{actnorm_init.1} parent=5 // pred_fallthru
        _
    $region6: #{actnorm_init.1} parent=1 // loop_footer
      %s19 = sadd.s32 1, %s15
    $region7: #{actnorm_init.1} parent=1 // loop_footer_branch
      %14 = sbr.rel target = $region3
    $region8: #{actnorm_init.1} parent=1 // loop_exit
      _
    %295 = vsyncpa [#allocation3], 1
    %s296 = scalar_lea.sflag [#allocation3], 1
    %297 = vsyncpa %s296, 1
    %298 = vsyncpa [#allocation4], 1
    %s299 = scalar_lea.sflag [#allocation4], 1
    %300 = vsyncpa %s299, 1
    %301 = vsyncpa [#allocation7], 1

</llo_original>
